<compile_context>
chip_gen: v7x
topology: tpu7x:2x2x1
jax: 0.10.0
libtpu: 0.0.40
codegen_flags: <defaults>
</compile_context>

<pallas_src>
import functools

import jax
import jax.numpy as jnp
from jax.experimental import pallas as pl
from jax.experimental.pallas import tpu as pltpu


# ----------------------- per-generation VMEM / tile caps ---------------------

def _tpu_vmem_capacity():
    try:
        info = pltpu.get_tpu_info()
        cap = int(getattr(info, "vmem_capacity_bytes", 0) or 0)
        if cap > 0:
            return cap
    except Exception:
        pass
    return 64 << 20  # conservative (v7x-sized) default


_VMEM_CAP = _tpu_vmem_capacity()
# Scoped limit: leave headroom under physical VMEM for double-buffering etc.
VMEM_LIMIT = min(_VMEM_CAP * 5 // 8, 100 << 20)   # ~80 MiB on 128-MiB parts, ~40 MiB on v7x
_BIG_VMEM = _VMEM_CAP >= (100 << 20)              # v5e / v6e (128 MiB) vs v7x (64 MiB)

_TM_CAP = 512 if _BIG_VMEM else 256   # M (sublane) tile cap
_TN_CAP = 512                         # N (lane) tile cap
_TK_CAP = 2048 if _BIG_VMEM else 1024  # K reduction tile cap (plain GEMMs)
_TF_CAP = 1024 if _BIG_VMEM else 256   # Dff tile cap in the fused FFN


def _cparams(semantics):
    return pltpu.CompilerParams(dimension_semantics=semantics,
                                vmem_limit_bytes=VMEM_LIMIT)


# ------------------------------ tiling helpers -------------------------------

def _tile(dim, cap, multiple):
    """Largest divisor of `dim` that is <= cap and a multiple of `multiple`."""
    if dim <= cap:
        return dim
    start = cap - (cap % multiple)
    for t in range(start, multiple - 1, -multiple):
        if dim % t == 0:
            return t
    return dim  # irregular dim: full extent is always a legal block


def _tile_m(m):
    return _tile(m, _TM_CAP, 8)


def _tile_n(n):
    return _tile(n, _TN_CAP, 128)


def _tile_k(k):
    return _tile(k, _TK_CAP, 128)


def _tq_tile(batch, t):
    cap = _TM_CAP
    if batch == 1 and t > 16:
        cap = min(cap, t // 2)   # keep >=2 'parallel' grid steps for 2-TC chips
    return _tile(t, cap, 8)


def _head_block(n_heads, tq, tk, dk, d_model, itemsize, budget):
    """Heads per SDPA grid step.  Legal candidates are H itself or a
    multiple-of-8 divisor of H (sublane tiling rule); pick the largest that
    fits the VMEM budget, else the SMALLEST legal candidate."""
    cands = sorted({n_heads} | {d for d in range(8, n_heads, 8)
                                if n_heads % d == 0}, reverse=True)
    for hb in cands:
        need = (2 * (tq * hb * dk + 2 * tk * hb * dk + hb * dk * d_model) * itemsize
                + 4 * (tq * tk + 3 * tq * d_model))
        if need <= budget:
            return hb
    # TODO(synk): for very long Tk the real fix is a flash/online-softmax SDPA
    # with Tk tiled as an 'arbitrary' axis; here we just take the smallest block.
    return cands[-1]


# ------------------------------- Pallas kernels -------------------------------

def ln_matmul_kernel(x_ref, g_ref, bln_ref, w_ref, b_ref, o_ref):
    """out = LayerNorm(x) @ W + b   (LN fused into the matmul's M tile)."""
    x = x_ref[...].astype(jnp.float32)
    mu = jnp.mean(x, axis=-1, keepdims=True)
    var = jnp.mean((x - mu) ** 2, axis=-1, keepdims=True)
    xn = (x - mu) * jax.lax.rsqrt(var + 1e-6) * g_ref[...] + bln_ref[...]
    y = jnp.dot(xn.astype(w_ref.dtype), w_ref[...],
                preferred_element_type=jnp.float32)
    o_ref[...] = (y + b_ref[...]).astype(o_ref.dtype)


def matmul_bias_kernel(x_ref, w_ref, b_ref, o_ref, acc_ref):
    """out = x @ W + b, with K tiled as a reduction grid axis (f32 accumulate)."""
    k = pl.program_id(2)

    @pl.when(k == 0)
    def _():
        acc_ref[...] = jnp.zeros_like(acc_ref)

    acc_ref[...] += jnp.dot(x_ref[...].astype(w_ref.dtype), w_ref[...],
                            preferred_element_type=jnp.float32)

    @pl.when(k == pl.num_programs(2) - 1)
    def _():
        o_ref[...] = (acc_ref[...] + b_ref[...]).astype(o_ref.dtype)


def ffn_kernel(x_ref, g_ref, bln_ref, w1_ref, b1_ref, w2_ref, b2_ref,
               o_ref, xn_ref, acc_ref):
    """out = x + relu(LN(x) @ W1 + b1) @ W2 + b2.
    Dff is a reduction grid axis; LN(x) is computed ONCE per M tile (f==0)
    into VMEM scratch and reused; the ReLU intermediate never touches HBM."""
    f = pl.program_id(1)

    @pl.when(f == 0)
    def _():
        x = x_ref[...].astype(jnp.float32)
        mu = jnp.mean(x, axis=-1, keepdims=True)
        var = jnp.mean((x - mu) ** 2, axis=-1, keepdims=True)
        xn = (x - mu) * jax.lax.rsqrt(var + 1e-6) * g_ref[...] + bln_ref[...]
        xn_ref[...] = xn.astype(xn_ref.dtype)
        acc_ref[...] = jnp.zeros_like(acc_ref)

    h = jnp.dot(xn_ref[...], w1_ref[...],
                preferred_element_type=jnp.float32) + b1_ref[...]
    h = jnp.maximum(h, 0.0)
    acc_ref[...] += jnp.dot(h.astype(w2_ref.dtype), w2_ref[...],
                            preferred_element_type=jnp.float32)

    @pl.when(f == pl.num_programs(1) - 1)
    def _():
        o_ref[...] = (acc_ref[...] + b2_ref[...]
                      + x_ref[...].astype(jnp.float32)).astype(o_ref.dtype)


def attn_out_res_kernel(q_ref, k_ref, v_ref, m_ref, wo_ref, bo_ref, r_ref,
                        o_ref, acc_ref, *, scale):
    """Fused SDPA + output projection + residual for a block of heads.
    q_ref: [tq, Hb, dk], k/v_ref: [Tk, Hb, dk], wo_ref: [Hb*dk, D].
    Head-block axis is an 'arbitrary' reduction into a [tq, D] f32 acc;
    output is a lane-dense [tq, D] block."""
    hblk = pl.program_id(2)

    @pl.when(hblk == 0)
    def _():
        acc_ref[...] = jnp.zeros_like(acc_ref)

    q = q_ref[...].astype(jnp.float32) * scale        # scale folded into q
    k = k_ref[...].astype(jnp.float32)
    mask = m_ref[...]                                 # [1|tq, Tk]
    hb = q.shape[1]

    outs = []
    for hh in range(hb):                              # static unroll: plain 2-D MXU dots
        s = jax.lax.dot_general(q[:, hh, :], k[:, hh, :],
                                (((1,), (1,)), ((), ())),
                                preferred_element_type=jnp.float32)    # [tq, Tk]
        s = jnp.where(mask != 0, s, -1e9)             # masked_fill semantics
        s = s - jnp.max(s, axis=-1, keepdims=True)
        p = jnp.exp(s)
        p = p * pl.reciprocal(jnp.sum(p, axis=-1, keepdims=True), approx=False)
        outs.append(jnp.dot(p.astype(v_ref.dtype), v_ref[:, hh, :],
                            preferred_element_type=jnp.float32))       # [tq, dk]

    o_heads = jnp.concatenate(outs, axis=-1)          # [tq, Hb*dk] lane-dense
    acc_ref[...] += jnp.dot(o_heads.astype(wo_ref.dtype), wo_ref[...],
                            preferred_element_type=jnp.float32)

    @pl.when(hblk == pl.num_programs(2) - 1)
    def _():
        o_ref[...] = (acc_ref[...] + bo_ref[...]
                      + r_ref[...].astype(jnp.float32)).astype(o_ref.dtype)


# -------------------------------- thin wrappers --------------------------------

def ln_matmul(x2d, g, b_ln, w, b):
    """LayerNorm(x) @ W + b.  K stays whole (LN needs the full feature row);
    grid is weight-resident: M is the innermost axis so the (K, tn) weight tile
    is DMA'd once per N tile instead of M/tm times."""
    M, K = x2d.shape
    N = w.shape[1]
    tm, tn = _tile_m(M), _tile_n(N)
    return pl.pallas_call(
        ln_matmul_kernel,
        out_shape=jax.ShapeDtypeStruct((M, N), x2d.dtype),
        grid=(N // tn, M // tm),
        in_specs=[
            pl.BlockSpec((tm, K), lambda j, i: (i, 0)),
            pl.BlockSpec((1, K), lambda j, i: (0, 0)),
            pl.BlockSpec((1, K), lambda j, i: (0, 0)),
            pl.BlockSpec((K, tn), lambda j, i: (0, j)),   # resident across inner i
            pl.BlockSpec((1, tn), lambda j, i: (0, j)),
        ],
        out_specs=pl.BlockSpec((tm, tn), lambda j, i: (i, j)),
        compiler_params=_cparams(("parallel", "parallel")),
    )(x2d, g.reshape(1, -1), b_ln.reshape(1, -1), w, b.reshape(1, -1))


def linear(x2d, w, b):
    """x @ W + b with a K reduction grid axis (bounded per-step VMEM)."""
    M, K = x2d.shape
    N = w.shape[1]
    tm, tn, tk = _tile_m(M), _tile_n(N), _tile_k(K)
    return pl.pallas_call(
        matmul_bias_kernel,
        out_shape=jax.ShapeDtypeStruct((M, N), x2d.dtype),
        grid=(N // tn, M // tm, K // tk),
        in_specs=[
            pl.BlockSpec((tm, tk), lambda j, i, k: (i, k)),
            pl.BlockSpec((tk, tn), lambda j, i, k: (k, j)),
            pl.BlockSpec((1, tn), lambda j, i, k: (0, j)),
        ],
        out_specs=pl.BlockSpec((tm, tn), lambda j, i, k: (i, j)),
        scratch_shapes=[pltpu.VMEM((tm, tn), jnp.float32)],
        compiler_params=_cparams(("parallel", "parallel", "arbitrary")),
    )(x2d, w, b.reshape(1, -1))


def ffn(x2d, g, b_ln, w1, b1, w2, b2):
    M, D = x2d.shape
    Dff = w1.shape[1]
    tm = _tile_m(M)
    tf = _tile(Dff, _TF_CAP, 128)
    return pl.pallas_call(
        ffn_kernel,
        out_shape=jax.ShapeDtypeStruct((M, D), x2d.dtype),
        grid=(M // tm, Dff // tf),
        in_specs=[
            pl.BlockSpec((tm, D), lambda i, f: (i, 0)),   # x: resident (LN input + residual)
            pl.BlockSpec((1, D), lambda i, f: (0, 0)),    # ln gamma
            pl.BlockSpec((1, D), lambda i, f: (0, 0)),    # ln beta
            pl.BlockSpec((D, tf), lambda i, f: (0, f)),   # W1 column block
            pl.BlockSpec((1, tf), lambda i, f: (0, f)),   # b1 block
            pl.BlockSpec((tf, D), lambda i, f: (f, 0)),   # W2 row block
            pl.BlockSpec((1, D), lambda i, f: (0, 0)),    # b2
        ],
        out_specs=pl.BlockSpec((tm, D), lambda i, f: (i, 0)),
        scratch_shapes=[pltpu.VMEM((tm, D), w1.dtype),      # LN(x), computed once per M tile
                        pltpu.VMEM((tm, D), jnp.float32)],  # f32 accumulator
        compiler_params=_cparams(("parallel", "arbitrary")),
    )(x2d, g.reshape(1, -1), b_ln.reshape(1, -1),
      w1, b1.reshape(1, -1), w2, b2.reshape(1, -1))


def sdpa_wo_residual(q5, k5, v5, q_idx, k_idx, v_idx, mask, wo, bo, residual):
    """Fused SDPA + output projection + residual.
    q5: [B, Tq, nq, H, dk] slab (e.g. the fused QKV projection output),
    k5/v5: [B, Tk, nk, H, dk]; q_idx/k_idx/v_idx select along axis 2 so the
    fused QKV / KV projection output is used without any column-slice copies.
    mask: [1|B, 1|Tq, Tk] (never broadcast in HBM).  residual: [B, Tq, D]."""
    B, Tq, _, H, dk = q5.shape
    Tk = k5.shape[1]
    D = wo.shape[1]
    tq = _tq_tile(B, Tq)
    Hb = _head_block(H, tq, Tk, dk, D, q5.dtype.itemsize, VMEM_LIMIT // 2)
    scale = 1.0 / (dk ** 0.5)

    mb, mq = mask.shape[0], mask.shape[1]
    m_rows = 1 if mq == 1 else tq

    def mask_map(b, t, h):
        return (b if mb != 1 else 0, t if mq != 1 else 0, 0)

    kernel = functools.partial(attn_out_res_kernel, scale=scale)
    return pl.pallas_call(
        kernel,
        out_shape=jax.ShapeDtypeStruct((B, Tq, D), residual.dtype),
        grid=(B, Tq // tq, H // Hb),
        in_specs=[
            pl.BlockSpec((None, tq, None, Hb, dk),
                         lambda b, t, h: (b, t, q_idx, h, 0)),
            pl.BlockSpec((None, Tk, None, Hb, dk),
                         lambda b, t, h: (b, 0, k_idx, h, 0)),
            pl.BlockSpec((None, Tk, None, Hb, dk),
                         lambda b, t, h: (b, 0, v_idx, h, 0)),
            pl.BlockSpec((None, m_rows, Tk), mask_map),
            pl.BlockSpec((Hb * dk, D), lambda b, t, h: (h, 0)),   # Wo head-block rows
            pl.BlockSpec((1, D), lambda b, t, h: (0, 0)),
            pl.BlockSpec((None, tq, D), lambda b, t, h: (b, t, 0)),  # residual
        ],
        out_specs=pl.BlockSpec((None, tq, D), lambda b, t, h: (b, t, 0)),
        scratch_shapes=[pltpu.VMEM((tq, D), jnp.float32)],
        compiler_params=_cparams(("parallel", "parallel", "arbitrary")),
    )(q5, k5, v5, mask, wo, bo.reshape(1, -1), residual)


# ------------------------------- decoder forward -------------------------------

def decoder_layer_forward(x, memory, source_mask, target_mask, params):
    B, T, D = x.shape
    S = memory.shape[1]
    H = params["heads"]
    dk = D // H

    sa, ca, ff = params["self_attn"], params["src_attn"], params["ff"]
    # Fused projection weights (pre-fuse once in a real model).
    # TODO(synk): store weights in bf16 in production -- kernels cast activations
    # to w.dtype (bf16 MXU, f32 accumulate); kept f32 here for the f32 reference check.
    w_qkv = jnp.concatenate([sa["wq"], sa["wk"], sa["wv"]], axis=1)   # [D, 3D]
    b_qkv = jnp.concatenate([sa["bq"], sa["bk"], sa["bv"]])           # [3D]
    w_kv = jnp.concatenate([ca["wk"], ca["wv"]], axis=1)              # [D, 2D]
    b_kv = jnp.concatenate([ca["bk"], ca["bv"]])                      # [2D]

    # ---- sublayer 0: self-attention (pre-norm; LN fused into the QKV matmul,
    #      Wo projection + residual fused into the SDPA epilogue) ----
    qkv = ln_matmul(x.reshape(B * T, D), params["ln0_g"], params["ln0_b"],
                    w_qkv, b_qkv)                                     # [B*T, 3D]
    qkv5 = qkv.reshape(B, T, 3, H, dk)                                # metadata-only reshape
    x = sdpa_wo_residual(qkv5, qkv5, qkv5, 0, 1, 2, target_mask,
                         sa["wo"], sa["bo"], x)                       # [B, T, D]

    # ---- sublayer 1: source (cross) attention ----
    q = ln_matmul(x.reshape(B * T, D), params["ln1_g"], params["ln1_b"],
                  ca["wq"], ca["bq"])                                 # [B*T, D]
    kv = linear(memory.reshape(B * S, D), w_kv, b_kv)                 # [B*S, 2D]
    q5 = q.reshape(B, T, 1, H, dk)
    kv5 = kv.reshape(B, S, 2, H, dk)
    x = sdpa_wo_residual(q5, kv5, kv5, 0, 0, 1, source_mask,
                         ca["wo"], ca["bo"], x)                       # [B, T, D]

    # ---- sublayer 2: position-wise feed-forward (fully fused) ----
    y = ffn(x.reshape(B * T, D), params["ln2_g"], params["ln2_b"],
            ff["w1"], ff["b1"], ff["w2"], ff["b2"])
    return y.reshape(B, T, D)


# ------------------------------ pure-JAX reference ------------------------------

def _ref_forward(x, memory, source_mask, target_mask, params):
    def ln(h, g, b):
        mu = h.mean(-1, keepdims=True)
        var = ((h - mu) ** 2).mean(-1, keepdims=True)
        return (h - mu) / jnp.sqrt(var + 1e-6) * g + b

    def mha(xq, xkv, mask, p, H):
        B, Tq, D = xq.shape
        Tk = xkv.shape[1]
        dk = D // H
        q = (xq @ p["wq"] + p["bq"]).reshape(B, Tq, H, dk).transpose(0, 2, 1, 3)
        k = (xkv @ p["wk"] + p["bk"]).reshape(B, Tk, H, dk).transpose(0, 2, 1, 3)
        v = (xkv @ p["wv"] + p["bv"]).reshape(B, Tk, H, dk).transpose(0, 2, 1, 3)
        s = jnp.einsum("bhqd,bhkd->bhqk", q, k) / jnp.sqrt(dk)
        s = jnp.where(mask[:, None, :, :] != 0, s, -1e9)
        p_attn = jax.nn.softmax(s, axis=-1)
        o = jnp.einsum("bhqk,bhkd->bhqd", p_attn, v)
        o = o.transpose(0, 2, 1, 3).reshape(B, Tq, D)
        return o @ p["wo"] + p["bo"]

    H = params["heads"]
    h = ln(x, params["ln0_g"], params["ln0_b"])
    x = x + mha(h, h, target_mask, params["self_attn"], H)
    h = ln(x, params["ln1_g"], params["ln1_b"])
    x = x + mha(h, memory, source_mask, params["src_attn"], H)
    h = ln(x, params["ln2_g"], params["ln2_b"])
    ff_out = jnp.maximum(h @ params["ff"]["w1"] + params["ff"]["b1"], 0.0) \
        @ params["ff"]["w2"] + params["ff"]["b2"]
    return x + ff_out


# ------------------------------------- main -------------------------------------

def init_params(key, D, H, Dff):
    ks = list(jax.random.split(key, 12))

    def w(shape):
        return jax.random.normal(ks.pop(), shape, jnp.float32) * 0.02

    def attn_params():
        return {"wq": w((D, D)), "bq": jnp.zeros((D,), jnp.float32),
                "wk": w((D, D)), "bk": jnp.zeros((D,), jnp.float32),
                "wv": w((D, D)), "bv": jnp.zeros((D,), jnp.float32),
                "wo": w((D, D)), "bo": jnp.zeros((D,), jnp.float32)}

    return {
        "heads": H,
        "ln0_g": jnp.ones((D,), jnp.float32), "ln0_b": jnp.zeros((D,), jnp.float32),
        "ln1_g": jnp.ones((D,), jnp.float32), "ln1_b": jnp.zeros((D,), jnp.float32),
        "ln2_g": jnp.ones((D,), jnp.float32), "ln2_b": jnp.zeros((D,), jnp.float32),
        "self_attn": attn_params(),
        "src_attn": attn_params(),
        "ff": {"w1": w((D, Dff)), "b1": jnp.zeros((Dff,), jnp.float32),
               "w2": w((Dff, D)), "b2": jnp.zeros((D,), jnp.float32)},
    }


if __name__ == "__main__":
    B, T, S, D, H, Dff = 2, 8, 8, 32, 4, 64

    root = jax.random.PRNGKey(0)
    kx, km, kp = jax.random.split(root, 3)
    x = jax.random.normal(kx, (B, T, D), jnp.float32)
    memory = jax.random.normal(km, (B, S, D), jnp.float32)
    # Causal target mask kept batch-broadcast ([1, T, T]; never materialized per
    # batch element in HBM); padding-style source mask [B, 1, S].
    target_mask = jnp.tril(jnp.ones((T, T), jnp.float32))[None]      # [1, T, T]
    source_mask = jnp.ones((B, 1, S), jnp.float32)
    params = init_params(kp, D, H, Dff)

    out = decoder_layer_forward(x, memory, source_mask, target_mask, params)
    out = jax.block_until_ready(out)

    ref = _ref_forward(x, memory, source_mask, target_mask, params)
    assert out.shape == (B, T, D)
    assert jnp.allclose(out, ref, rtol=1e-3, atol=1e-3), "mismatch vs JAX reference"
    print("KERNEL_OK")
</pallas_src>

<mosaic_0001>
module attributes {stable_mosaic.version = 11 : i64} {
  func.func @ln_matmul_kernel(%arg0: i32, %arg1: i32, %arg2: memref<16x32xf32, #tpu.memory_space<vmem>>, %arg3: memref<1x32xf32, #tpu.memory_space<vmem>>, %arg4: memref<1x32xf32, #tpu.memory_space<vmem>>, %arg5: memref<32x96xf32, #tpu.memory_space<vmem>>, %arg6: memref<1x96xf32, #tpu.memory_space<vmem>>, %arg7: memref<16x96xf32, #tpu.memory_space<vmem>>) attributes {dimension_semantics = [#tpu.dimension_semantics<parallel>, #tpu.dimension_semantics<parallel>], iteration_bounds = array<i64: 1, 1>, scalar_prefetch = 0 : i64, scratch_operands = 0 : i64, tpu.core_type = #tpu.core_type<tc>, window_params = [{transform_indices = @transform_0, window_bounds = array<i64: 16, 32>}, {pipeline_mode = #tpu.pipeline_mode<synchronous>, transform_indices = @transform_1, window_bounds = array<i64: 1, 32>}, {pipeline_mode = #tpu.pipeline_mode<synchronous>, transform_indices = @transform_2, window_bounds = array<i64: 1, 32>}, {transform_indices = @transform_3, window_bounds = array<i64: 32, 96>}, {transform_indices = @transform_4, window_bounds = array<i64: 1, 96>}, {transform_indices = @transform_5, window_bounds = array<i64: 16, 96>}]} {
    %c0 = arith.constant 0 : index
    %c0_0 = arith.constant 0 : index
    %0 = vector.load %arg2[%c0, %c0_0] : memref<16x32xf32, #tpu.memory_space<vmem>>, vector<16x32xf32>
    %cst = arith.constant dense<0.000000e+00> : vector<16xf32>
    %1 = vector.multi_reduction <add>, %0, %cst [1] : vector<16x32xf32> to vector<16xf32>
    %2 = vector.shape_cast %1 : vector<16xf32> to vector<16x1xf32>
    %cst_1 = arith.constant 3.200000e+01 : f32
    %3 = vector.broadcast %cst_1 : f32 to vector<16x1xf32>
    %4 = arith.divf %2, %3 : vector<16x1xf32>
    %5 = vector.broadcast %4 : vector<16x1xf32> to vector<16x32xf32>
    %6 = arith.subf %0, %5 : vector<16x32xf32>
    %7 = arith.mulf %6, %6 : vector<16x32xf32>
    %cst_2 = arith.constant dense<0.000000e+00> : vector<16xf32>
    %8 = vector.multi_reduction <add>, %7, %cst_2 [1] : vector<16x32xf32> to vector<16xf32>
    %9 = vector.shape_cast %8 : vector<16xf32> to vector<16x1xf32>
    %cst_3 = arith.constant 3.200000e+01 : f32
    %10 = vector.broadcast %cst_3 : f32 to vector<16x1xf32>
    %11 = arith.divf %9, %10 : vector<16x1xf32>
    %12 = vector.broadcast %4 : vector<16x1xf32> to vector<16x32xf32>
    %13 = arith.subf %0, %12 : vector<16x32xf32>
    %cst_4 = arith.constant 9.99999997E-7 : f32
    %14 = vector.broadcast %cst_4 : f32 to vector<16x1xf32>
    %15 = arith.addf %11, %14 : vector<16x1xf32>
    %16 = math.rsqrt %15 : vector<16x1xf32>
    %17 = vector.broadcast %16 : vector<16x1xf32> to vector<16x32xf32>
    %18 = arith.mulf %13, %17 : vector<16x32xf32>
    %c0_5 = arith.constant 0 : index
    %c0_6 = arith.constant 0 : index
    %19 = vector.load %arg3[%c0_5, %c0_6] : memref<1x32xf32, #tpu.memory_space<vmem>>, vector<1x32xf32>
    %20 = vector.broadcast %19 : vector<1x32xf32> to vector<16x32xf32>
    %21 = arith.mulf %18, %20 : vector<16x32xf32>
    %c0_7 = arith.constant 0 : index
    %c0_8 = arith.constant 0 : index
    %22 = vector.load %arg4[%c0_7, %c0_8] : memref<1x32xf32, #tpu.memory_space<vmem>>, vector<1x32xf32>
    %23 = vector.broadcast %22 : vector<1x32xf32> to vector<16x32xf32>
    %24 = arith.addf %21, %23 : vector<16x32xf32>
    %c0_9 = arith.constant 0 : index
    %c0_10 = arith.constant 0 : index
    %25 = vector.load %arg5[%c0_9, %c0_10] : memref<32x96xf32, #tpu.memory_space<vmem>>, vector<32x96xf32>
    %cst_11 = arith.constant dense<0.000000e+00> : vector<16x96xf32>
    %26 = tpu.matmul %24, %25, %cst_11 {dimension_numbers = #tpu.dot_dimension_numbers<[1], [0], [0], [1], [0, 0, 1, 1], [], []>} : vector<16x32xf32>, vector<32x96xf32>, vector<16x96xf32> -> vector<16x96xf32>
    %c0_12 = arith.constant 0 : index
    %c0_13 = arith.constant 0 : index
    %27 = vector.load %arg6[%c0_12, %c0_13] : memref<1x96xf32, #tpu.memory_space<vmem>>, vector<1x96xf32>
    %28 = vector.broadcast %27 : vector<1x96xf32> to vector<16x96xf32>
    %29 = arith.addf %26, %28 : vector<16x96xf32>
    %c0_14 = arith.constant 0 : index
    %c0_15 = arith.constant 0 : index
    %30 = vector.load %arg7[%c0_14, %c0_15] : memref<16x96xf32, #tpu.memory_space<vmem>>, vector<16x96xf32>
    tpu.vector_store %arg7[%c0_14, %c0_15], %29 {strides = array<i32>} : memref<16x96xf32, #tpu.memory_space<vmem>>, vector<16x96xf32>,
    return
  }
  func.func @transform_0(%arg0: i32, %arg1: i32) -> (i32, i32) {
    %c0_i32 = arith.constant 0 : i32
    %c0_i32_0 = arith.constant 0 : i32
    return %arg1, %c0_i32 : i32, i32
  }
  func.func @transform_1(%arg0: i32, %arg1: i32) -> (i32, i32) {
    %c0_i32 = arith.constant 0 : i32
    %c0_i32_0 = arith.constant 0 : i32
    %c0_i32_1 = arith.constant 0 : i32
    return %c0_i32, %c0_i32_0 : i32, i32
  }
  func.func @transform_2(%arg0: i32, %arg1: i32) -> (i32, i32) {
    %c0_i32 = arith.constant 0 : i32
    %c0_i32_0 = arith.constant 0 : i32
    %c0_i32_1 = arith.constant 0 : i32
    return %c0_i32, %c0_i32_0 : i32, i32
  }
  func.func @transform_3(%arg0: i32, %arg1: i32) -> (i32, i32) {
    %c0_i32 = arith.constant 0 : i32
    %c0_i32_0 = arith.constant 0 : i32
    return %c0_i32, %arg0 : i32, i32
  }
  func.func @transform_4(%arg0: i32, %arg1: i32) -> (i32, i32) {
    %c0_i32 = arith.constant 0 : i32
    %c0_i32_0 = arith.constant 0 : i32
    return %c0_i32, %arg0 : i32, i32
  }
  func.func @transform_5(%arg0: i32, %arg1: i32) -> (i32, i32) {
    %c0_i32 = arith.constant 0 : i32
    return %arg1, %arg0 : i32, i32
  }
}

</mosaic_0001>

<llo_original>
// kernel: tpu_custom_call.1
$region0: #{tpu_custom_call.1}
  #allocation0 [shape = 'u32[]', space=smem, size = 0x4, offset = 0x4, fixed_abs, tag = 'smem constant byte address 0x4 - core index']
  #allocation1 [shape = 'u32[144,128]{1,0:T(1,128)}', space=vmem, size = 0x12000, scoped, tag = 'internal scratch']
  %s0 = inlined_call_operand.hbm [shape: f32[16,32], index: 0, kind: input, shape index: {}]
  %s1 = inlined_call_operand.vmem [shape: f32[1,32], index: 1, kind: input, shape index: {}]
  %s2 = inlined_call_operand.vmem [shape: f32[1,32], index: 2, kind: input, shape index: {}]
  %s3 = inlined_call_operand.hbm [shape: f32[32,96], index: 3, kind: input, shape index: {}]
  %s4 = inlined_call_operand.vmem [shape: f32[1,96], index: 4, kind: input, shape index: {}]
  %s5 = inlined_call_operand.hbm [shape: f32[16,96], index: 5, kind: output, shape index: {}]
  %s6 = sld [smem:[#allocation0]]
  $region38: #{tpu_custom_call.1} parent=0
    _
  %s8 = ssub.s32 1, %s6
  %s9 = scalar_select 0, %s8, %s6
  $region1: #{tpu_custom_call.1} parent=0
    #allocation2 [shape = 'u8[8192]{0}', space=vmem, size = 0x2000, scoped, tag = 'input window, operand 0, single buffered']
    #allocation3 [shape = 's32[1]{0}', space=sflag, size = 0x4, scoped, tag = 'scoped memory for tpu_custom_call.1']
    #allocation4 [shape = 's32[1]{0}', space=sflag, size = 0x4, scoped, tag = 'scoped memory for tpu_custom_call.1']
    #allocation5 [shape = 'u8[16384]{0}', space=vmem, size = 0x4000, scoped, tag = 'input window, operand 3, single buffered']
    #allocation6 [shape = 's32[1]{0}', space=sflag, size = 0x4, scoped, tag = 'scoped memory for tpu_custom_call.1']
    #allocation7 [shape = 'u8[8192]{0}', space=vmem, size = 0x2000, scoped, tag = 'output window, operand 0, single buffered']
    %10 = vsyncpa [#allocation3], 0
    %11 = vsyncpa [#allocation6], 0
    %12 = vsyncpa [#allocation4], 0
    // Predicated region
    $region2: #{tpu_custom_call.1} parent=1 // pred_check
      _
    $region3: #{tpu_custom_call.1} parent=1 // pred_check_branch
      %14 = sbr.rel (0) target = $region5
    $region4: #{tpu_custom_call.1} parent=1 // pred_region
      %s16 = ssub.s32 256, 256
      %17 = vsyncadd [#allocation3], %s16
      %s18 = sshll.u32 [#allocation2], 4
      %s19 = int_to_ptr.vmem [resolvable:$true] %s18
      %24 = dma.hbm_to_vmem [thread:$0]  %s0, 256, %s19, [#allocation3], 128, 128, 8
    $region5: #{tpu_custom_call.1} parent=1 // pred_fallthru
      _
    // Predicated region
    $region6: #{tpu_custom_call.1} parent=1 // pred_check
      _
    $region7: #{tpu_custom_call.1} parent=1 // pred_check_branch
      %26 = sbr.rel (0) target = $region9
    $region8: #{tpu_custom_call.1} parent=1 // pred_region
      _
    $region9: #{tpu_custom_call.1} parent=1 // pred_fallthru
      _
    // Predicated region
    $region10: #{tpu_custom_call.1} parent=1 // pred_check
      _
    $region11: #{tpu_custom_call.1} parent=1 // pred_check_branch
      %28 = sbr.rel (0) target = $region13
    $region12: #{tpu_custom_call.1} parent=1 // pred_region
      _
    $region13: #{tpu_custom_call.1} parent=1 // pred_fallthru
      _
    // Predicated region
    $region14: #{tpu_custom_call.1} parent=1 // pred_check
      _
    $region15: #{tpu_custom_call.1} parent=1 // pred_check_branch
      %30 = sbr.rel (0) target = $region17
    $region16: #{tpu_custom_call.1} parent=1 // pred_region
      %s32 = ssub.s32 512, 512
      %33 = vsyncadd [#allocation6], %s32
      %s34 = sshll.u32 [#allocation5], 4
      %s35 = int_to_ptr.vmem [resolvable:$true] %s34
      %40 = dma.hbm_to_vmem [thread:$0]  %s3, 512, %s35, [#allocation6], 128, 128, 8
    $region17: #{tpu_custom_call.1} parent=1 // pred_fallthru
      _
    // Predicated region
    $region18: #{tpu_custom_call.1} parent=1 // pred_check
      _
    $region19: #{tpu_custom_call.1} parent=1 // pred_check_branch
      %42 = sbr.rel (0) target = $region21
    $region20: #{tpu_custom_call.1} parent=1 // pred_region
      _
    $region21: #{tpu_custom_call.1} parent=1 // pred_fallthru
      _
    // Predicated region
    $region22: #{tpu_custom_call.1} parent=1 // pred_check
      _
    $region23: #{tpu_custom_call.1} parent=1 // pred_check_branch
      %44 = sbr.rel (0) target = $region25
    $region24: #{tpu_custom_call.1} parent=1 // pred_region
      %45 = dma.done [#allocation3], 256
    $region25: #{tpu_custom_call.1} parent=1 // pred_fallthru
      _
    // Predicated region
    $region26: #{tpu_custom_call.1} parent=1 // pred_check
      _
    $region27: #{tpu_custom_call.1} parent=1 // pred_check_branch
      %47 = sbr.rel (0) target = $region29
    $region28: #{tpu_custom_call.1} parent=1 // pred_region
      %48 = dma.done [#allocation6], 512
    $region29: #{tpu_custom_call.1} parent=1 // pred_fallthru
      _
    %v49 = vld [vmem:[#allocation2] sm:$0xff]
    %v50 = vld [vmem:[#allocation2 + $0x8] sm:$0xff]
    %vm51 = vcmask 261120
    %v52 = vsel %vm51, %v49, 0.0
    %53 = vadd.xlane.f32.xlu0 %v52
    %v54 = vpop.xlane.xlu0 %53
    %v55 = vsel %vm51, %v50, 0.0
    %56 = vadd.xlane.f32.xlu0 %v55
    %v57 = vpop.xlane.xlu0 %56
    %v58 = vrcp.pop 32.0
    %v59 = vmul.f32 %v54, %v58
    %v60 = vmul.f32 %v57, %v58
    %v61 = vsub.f32 %v49, %v59
    %v62 = vsub.f32 %v50, %v60
    %v63 = vmul.f32 %v61, %v61
    %v64 = vmul.f32 %v62, %v62
    %v65 = vsel %vm51, %v63, 0.0
    %66 = vadd.xlane.f32.xlu0 %v65
    %v67 = vpop.xlane.xlu0 %66
    %v68 = vsel %vm51, %v64, 0.0
    %69 = vadd.xlane.f32.xlu0 %v68
    %v70 = vpop.xlane.xlu0 %69
    %v71 = vmul.f32 %v67, %v58
    %v72 = vmul.f32 %v70, %v58
    %v73 = vadd.f32 %v71, 1e-06
    %v74 = vadd.f32 %v72, 1e-06
    %v75 = vrsqrt.pop %v73
    %v76 = vrsqrt.pop %v74
    %v77 = vmul.f32 %v61, %v75
    %v78 = vmul.f32 %v62, %v76
    %v79 = vld [vmem:[%s1] sm:$0x1]
    %v81 = vlaneseq
    %v82 = vshrl.u32 %v81, 7
    %v83 = vsub.s32 0, %v82
    %v84 = vrot.slane %v79, %v83
    %v86 = vmul.f32 %v77, %v84
    %v87 = vmul.f32 %v78, %v84
    %v88 = vld [vmem:[%s2] sm:$0x1]
    %v90 = vlaneseq
    %v91 = vshrl.u32 %v90, 7
    %v92 = vsub.s32 0, %v91
    %v93 = vrot.slane %v88, %v92
    %v95 = vadd.f32 %v86, %v93
    %v96 = vadd.f32 %v87, %v93
    %v97 = vld [vmem:[#allocation5] sm:$0xff]
    %v98 = vld [vmem:[#allocation5 + $0x8] sm:$0xff]
    %v99 = vld [vmem:[#allocation5 + $0x10] sm:$0xff]
    %v100 = vld [vmem:[#allocation5 + $0x18] sm:$0xff]
    %v101 = vld [vmem:[%s4] sm:$0x1]
    %v103 = vlaneseq
    %v104 = vshrl.u32 %v103, 7
    %v105 = vsub.s32 0, %v104
    %v106 = vrot.slane %v101, %v105
    %v109 = vsel %vm51, %v95, 0
    %v112 = vsel %vm51, %v96, 0
    %114 = vmatprep.subr.mxu0 0.0
    %115 = vmatpush1.msra.mxu0 %v97
    %116 = vmatprep.subr.mxu0 0.0
    %117 = vmatpush1.msra.mxu0 %v98
    %118 = vmatprep.subr.mxu0 0.0
    %119 = vmatpush1.msra.mxu0 %v99
    %120 = vmatprep.subr.mxu0 0.0
    %121 = vmatpush1.msra.mxu0 %v100
    %122 = vmatprep.subr.mxu0 0.0
    %123 = vmatpush1.msra.mxu0 0.0
    %124 = vmatprep.subr.mxu0 0.0
    %125 = vmatpush1.msra.mxu0 0.0
    %126 = vmatprep.subr.mxu0 0.0
    %127 = vmatpush1.msra.mxu0 0.0
    %128 = vmatprep.subr.mxu0 0.0
    %129 = vmatpush1.msra.mxu0 0.0
    %130 = vmatprep.subr.mxu0 0.0
    %131 = vmatpush1.msra.mxu0 0.0
    %132 = vmatprep.subr.mxu0 0.0
    %133 = vmatpush1.msra.mxu0 0.0
    %134 = vmatprep.subr.mxu0 0.0
    %135 = vmatpush1.msra.mxu0 0.0
    %136 = vmatprep.subr.mxu0 0.0
    %137 = vmatpush1.msra.mxu0 0.0
    %138 = vmatprep.subr.mxu0 0.0
    %139 = vmatpush1.msra.mxu0 0.0
    %140 = vmatprep.subr.mxu0 0.0
    %141 = vmatpush1.msra.mxu0 0.0
    %142 = vmatprep.subr.mxu0 0.0
    %143 = vmatpush1.msra.mxu0 0.0
    %144 = vmatprep.subr.mxu0 0.0
    %145 = vmatpush1.msra.mxu0 0.0
    %146 = vmatprep.subr.mxu0 0.0
    %147 = vmatpush1.msra.mxu0 0.0
    %148 = vmatprep.subr.mxu0 0.0
    %149 = vmatpush1.msra.mxu0 0.0
    %150 = vmatprep.subr.mxu0 0.0
    %151 = vmatpush1.msra.mxu0 0.0
    %152 = vmatprep.subr.mxu0 0.0
    %153 = vmatpush1.msra.mxu0 0.0
    %154 = vmatprep.subr.mxu0 0.0
    %155 = vmatpush1.msra.mxu0 0.0
    %156 = vmatprep.subr.mxu0 0.0
    %157 = vmatpush1.msra.mxu0 0.0
    %158 = vmatprep.subr.mxu0 0.0
    %159 = vmatpush1.msra.mxu0 0.0
    %160 = vmatprep.subr.mxu0 0.0
    %161 = vmatpush1.msra.mxu0 0.0
    %162 = vmatprep.subr.mxu0 0.0
    %163 = vmatpush1.msra.mxu0 0.0
    %164 = vmatprep.subr.mxu0 0.0
    %165 = vmatpush1.msra.mxu0 0.0
    %166 = vmatprep.subr.mxu0 0.0
    %167 = vmatpush1.msra.mxu0 0.0
    %168 = vmatprep.subr.mxu0 0.0
    %169 = vmatpush1.msra.mxu0 0.0
    %170 = vmatprep.subr.mxu0 0.0
    %171 = vmatpush1.msra.mxu0 0.0
    %172 = vmatprep.subr.mxu0 0.0
    %173 = vmatpush1.msra.mxu0 0.0
    %174 = vmatprep.subr.mxu0 0.0
    %175 = vmatpush1.msra.mxu0 0.0
    %176 = vmatprep.subr.mxu0 0.0
    %177 = vmatpush1.msra.mxu0 0.0
    %178 = vmatprep.mubr.f32.mxu0 0.0
    %179 = vmatmul.mubr.f32.gmra.mrb[0].mxu0 %v109
    %v180 = vpop.f32.mrb[0].mxu0
    %v181 = vadd.f32 %v106, %v180
    %v182 = vpop.f32.mrb[0].mxu0
    %183 = vmatprep.mubr.f32.mxu0 0.0
    %184 = vmatmul.mubr.f32.gmra.mrb[0].mxu0 %v112
    %v185 = vpop.f32.mrb[0].mxu0
    %v186 = vadd.f32 %v106, %v185
    %v187 = vpop.f32.mrb[0].mxu0
    %188 = vdwg.mxu0
    %vm189 = vcmask 785408
    %190 = vst.msk [vmem:[#allocation7] sm:$0xff] %vm189, %v181
    %191 = vst.msk [vmem:[#allocation7 + $0x8] sm:$0xff] %vm189, %v186
    // Predicated region
    $region30: #{tpu_custom_call.1} parent=1 // pred_check
      _
    $region31: #{tpu_custom_call.1} parent=1 // pred_check_branch
      %193 = sbr.rel (0) target = $region33
    $region32: #{tpu_custom_call.1} parent=1 // pred_region
      %s195 = ssub.s32 256, 256
      %196 = vsyncadd [#allocation4], %s195
      %s197 = sshll.u32 [#allocation7], 4
      %s198 = int_to_ptr.vmem [resolvable:$true] %s197
      %203 = dma.vmem_to_hbm [thread:$0]  %s198, 256, %s5, [#allocation4], 128, 128, 8
    $region33: #{tpu_custom_call.1} parent=1 // pred_fallthru
      _
    // Predicated region
    $region34: #{tpu_custom_call.1} parent=1 // pred_check
      _
    $region35: #{tpu_custom_call.1} parent=1 // pred_check_branch
      %205 = sbr.rel (0) target = $region37
    $region36: #{tpu_custom_call.1} parent=1 // pred_region
      %206 = dma.done [#allocation4], 256
    $region37: #{tpu_custom_call.1} parent=1 // pred_fallthru
      _
    %207 = vsyncpa [#allocation3], 1
    %208 = vsyncpa [#allocation6], 1
    %209 = vsyncpa [#allocation4], 1

</llo_original>
